<compile_context>
chip_gen: v5e
topology: v5e:2x2
jax: 0.10.0
libtpu: 0.0.40
codegen_flags: <defaults>
</compile_context>

<pallas_src>
import math

import jax
import jax.numpy as jnp
from jax.experimental import pallas as pl
from jax.experimental.pallas import tpu as pltpu


_VMEM_LIMIT_BYTES = 32 * 1024 * 1024      # safe scoped-VMEM cap on v5e / v6e / v7x
_RESIDENT_H_BYTES = 8 * 1024 * 1024       # keep resident h well inside the cap (v7x: 64 MiB phys)
_NEG_LARGE = -1e30  # finite "-inf": keeps (m_old - m_new) == 0.0 exactly in the rescale


def _round_up(x, m):
    return (x + m - 1) // m * m


# --------------------------------------------------------------------------------------
# Stage 1: projection + per-node attention scores (computed once, outside the N^2 loop)
# --------------------------------------------------------------------------------------
def _project_kernel(x_ref, w_ref, a2_ref, h_ref, s2_ref):
    # h tile = x_tile @ W on the MXU, f32 accumulate, stored bf16 & lane-padded to 128.
    h = jnp.dot(x_ref[...], w_ref[...], preferred_element_type=jnp.float32)
    h_ref[...] = h.astype(h_ref.dtype)
    # Per-node scores as one small MXU dot; output is lane-dense (128 cols, cols 0/1 used):
    #   s2[:, 0] = a_src . h[n]   (source / row term)
    #   s2[:, 1] = a_dst . h[n]   (dest   / column term)
    s2_ref[...] = jnp.dot(h, a2_ref[...], preferred_element_type=jnp.float32)


# --------------------------------------------------------------------------------------
# Stage 2: tiled masked attention + aggregation with online-max running statistics.
# The output block index (i, 0) is constant along the reduction axis j, so out_ref is
# VMEM-resident across the whole reduction and doubles as the accumulator.
# --------------------------------------------------------------------------------------
def _make_attn_kernel(alpha, tn, resident_h):
    alpha = float(alpha)  # leaky-relu negative slope, assumed in (0, 1]

    def kernel(adj_ref, h_ref, ssrc_ref, sdst_ref, out_ref, m_ref, rsum_ref):
        j = pl.program_id(1)

        @pl.when(j == 0)
        def _init():
            m_ref[...] = jnp.full_like(m_ref, _NEG_LARGE)
            rsum_ref[...] = jnp.zeros_like(rsum_ref)
            out_ref[...] = jnp.zeros_like(out_ref)

        if resident_h:
            # h / s_dst live fully in VMEM (constant block index); slice the j-th column tile.
            off = pl.multiple_of(j * tn, 128)
            h_tile = h_ref[pl.ds(off, tn), :]
            s_dst = sdst_ref[:, pl.ds(off, tn)]
        else:
            h_tile = h_ref[...]
            s_dst = sdst_ref[...]

        s = ssrc_ref[...] + s_dst                         # (tm,1)+(1,tn) -> (tm,tn)
        score = jnp.minimum(-s, -alpha * s)               # == -leakyrelu(s, alpha), one VPU pass
        mask = adj_ref[...] != 0                          # int8 nonzero pattern
        score = jnp.where(mask, score, _NEG_LARGE)

        m_old = m_ref[...]
        m_new = jnp.maximum(m_old, jnp.max(score, axis=1, keepdims=True))
        rescale = jnp.exp(m_old - m_new)                  # <= 1; exactly 1.0 when unchanged
        p = jnp.where(mask, jnp.exp(score - m_new), 0.0)  # exp never overflows

        rsum_ref[...] = rescale * rsum_ref[...] + jnp.sum(p, axis=1, keepdims=True)
        out_ref[...] = rescale * out_ref[...] + jnp.dot(
            p.astype(h_tile.dtype), h_tile,               # bf16 MXU inputs, f32 accumulate
            preferred_element_type=jnp.float32)
        m_ref[...] = m_new

        @pl.when(j == pl.num_programs(1) - 1)
        def _finalize():
            denom = rsum_ref[...]
            denom = jnp.where(denom > 0.0, denom, 1.0)    # guard edge-less / padded rows
            # exp(max) factor cancels between acc and rsum -> plain normalized average.
            out_ref[...] = out_ref[...] * pl.reciprocal(denom, approx=True)

    return kernel


def sp_graph_attention_forward(x, W, a, adj, alpha, *, tm=256, tn=1024, resident_h=None):
    """Forward pass of SpGraphAttentionLayer (inference).  Returns (N, out_features) f32.

    tm: node/row tile ("parallel" axis -> split across TensorCores on v7x).
    tn: neighbor/column tile (reduction axis).  Both are clamped to the padded node count
        and tn is kept a multiple of tm so padding stays one granule on small graphs.
    resident_h: True = keep h / dest scores fully in VMEM, False = stream per column tile,
        None = auto-select by size.
    """
    N, in_f = x.shape
    f_out = W.shape[1]
    f_pad = _round_up(f_out, 128)              # lane-dense h / output width

    n128 = _round_up(N, 128)
    tm = min(tm, n128)
    tn = min(tn, n128)
    tn = max(tm, (tn // tm) * tm)              # tn multiple of tm -> n_pad divisible by both
    n_pad = _round_up(N, tn)
    if n_pad // tm == 1 and tm >= 256:
        tm //= 2                               # let the parallel row axis split across 2 TCs (v7x)
    num_i, num_j = n_pad // tm, n_pad // tn

    if resident_h is None:
        resident_h = (n_pad * f_pad * 2) <= _RESIDENT_H_BYTES   # bf16 bytes

    # ---- wrapper-side layout plumbing (padding, dtype packing) ----
    x_p = jnp.zeros((n_pad, in_f), jnp.float32).at[:N].set(x.astype(jnp.float32))
    w_p = jnp.zeros((in_f, f_pad), jnp.float32).at[:, :f_out].set(W.astype(jnp.float32))
    a2 = jnp.zeros((f_pad, 128), jnp.float32)
    a2 = a2.at[:f_out, 0].set(a[0, :f_out].astype(jnp.float32))
    a2 = a2.at[:f_out, 1].set(a[0, f_out:].astype(jnp.float32))
    adj_p = jnp.zeros((n_pad, n_pad), jnp.int8).at[:N, :N].set((adj != 0).astype(jnp.int8))

    def cparams(sem):
        return pltpu.CompilerParams(dimension_semantics=sem,
                                    vmem_limit_bytes=_VMEM_LIMIT_BYTES)

    # ---- stage 1: h = x @ W and per-node scores, computed once ----
    h, s2 = pl.pallas_call(
        _project_kernel,
        out_shape=(jax.ShapeDtypeStruct((n_pad, f_pad), jnp.bfloat16),
                   jax.ShapeDtypeStruct((n_pad, 128), jnp.float32)),
        grid=(num_i,),
        in_specs=[pl.BlockSpec((tm, in_f), lambda i: (i, 0)),
                  pl.BlockSpec((in_f, f_pad), lambda i: (0, 0)),
                  pl.BlockSpec((f_pad, 128), lambda i: (0, 0))],
        out_specs=(pl.BlockSpec((tm, f_pad), lambda i: (i, 0)),
                   pl.BlockSpec((tm, 128), lambda i: (i, 0))),
        compiler_params=cparams(("parallel",)),
    )(x_p, w_p, a2)

    s_src = s2[:, 0:1]                         # (n_pad, 1): column layout, broadcast over j
    s_dst = s2[:, 1:2].reshape(1, n_pad)       # (1, n_pad): row layout -> no per-tile transpose

    if resident_h:
        h_spec = pl.BlockSpec((n_pad, f_pad), lambda i, j: (0, 0))     # loaded once, VMEM-resident
        sdst_spec = pl.BlockSpec((1, n_pad), lambda i, j: (0, 0))
    else:
        h_spec = pl.BlockSpec((tn, f_pad), lambda i, j: (j, 0))        # streamed column tile
        sdst_spec = pl.BlockSpec((1, tn), lambda i, j: (0, j))

    # ---- stage 2: tiled masked attention + aggregation ----
    out_p = pl.pallas_call(
        _make_attn_kernel(alpha, tn, resident_h),
        out_shape=jax.ShapeDtypeStruct((n_pad, f_pad), jnp.float32),
        grid=(num_i, num_j),
        in_specs=[pl.BlockSpec((tm, tn), lambda i, j: (i, j)),         # adjacency tile (int8)
                  h_spec,
                  pl.BlockSpec((tm, 1), lambda i, j: (i, 0)),          # source scores
                  sdst_spec],
        out_specs=pl.BlockSpec((tm, f_pad), lambda i, j: (i, 0)),      # resident accumulator
        scratch_shapes=[pltpu.VMEM((tm, 1), jnp.float32),              # running max
                        pltpu.VMEM((tm, 1), jnp.float32)],             # running row sum
        compiler_params=cparams(("parallel", "arbitrary")),
    )(adj_p, h, s_src, s_dst)

    return out_p[:N, :f_out]


def _reference(x, W, a, adj, alpha):
    """Pure-JAX dense reference (same math as the PyTorch module, inference mode)."""
    hp = jax.lax.Precision.HIGHEST
    h = jnp.dot(x, W, precision=hp)
    f = W.shape[1]
    s = (jnp.dot(h, a[0, :f], precision=hp)[:, None]
         + jnp.dot(h, a[0, f:], precision=hp)[None, :])
    lrelu = jnp.where(s > 0, s, alpha * s)
    e = jnp.where(adj != 0, jnp.exp(-lrelu), 0.0)
    rowsum = e.sum(axis=1, keepdims=True)
    return jnp.dot(e, h, precision=hp) / rowsum


if __name__ == "__main__":
    key = jax.random.PRNGKey(0)
    k_x, k_w, k_a, k_adj = jax.random.split(key, 4)

    N = 300              # nodes (padded to 512 internally -> 2 x 2 tile grid)
    in_features = 16
    out_features = 8
    alpha = 0.2          # leaky relu negative slope

    # node features
    x = jax.random.normal(k_x, (N, in_features), dtype=jnp.float32)

    # deterministic xavier_normal_-style parameter init (gain = 1.414), as in the module
    gain = 1.414
    std_w = gain * (2.0 / (in_features + out_features)) ** 0.5
    W = std_w * jax.random.normal(k_w, (in_features, out_features), dtype=jnp.float32)
    std_a = gain * (2.0 / (1 + 2 * out_features)) ** 0.5
    a = std_a * jax.random.normal(k_a, (1, 2 * out_features), dtype=jnp.float32)

    # sparse adjacency with self-loops (every row has >= 1 edge, as in real GAT usage)
    adj = (jax.random.uniform(k_adj, (N, N)) < 0.05).astype(jnp.float32)
    adj = jnp.maximum(adj, jnp.eye(N, dtype=jnp.float32))

    ref = _reference(x, W, a, adj, alpha)

    # Exercise both the VMEM-resident-h path (auto default at this size) and the streamed
    # fallback so both stage-2 code paths are validated on hardware.
    for resident in (True, False):
        out = sp_graph_attention_forward(x, W, a, adj, alpha, resident_h=resident)
        out = jax.block_until_ready(out)
        assert out.shape == (N, out_features)
        # bf16 MXU inputs + approx reciprocal => compare at the ~1-2% level vs the f32 reference
        max_err = jnp.max(jnp.abs(out - ref))
        assert jnp.allclose(out, ref, rtol=2e-2, atol=2e-2), (
            f"mismatch vs reference (resident_h={resident}, max abs err {max_err})")

    print("KERNEL_OK")
</pallas_src>

<mosaic_0001>
module attributes {stable_mosaic.version = 11 : i64} {
  func.func @_project_kernel(%arg0: i32, %arg1: memref<256x16xf32, #tpu.memory_space<vmem>>, %arg2: memref<16x128xf32, #tpu.memory_space<vmem>>, %arg3: memref<128x128xf32, #tpu.memory_space<vmem>>, %arg4: memref<256x128xbf16, #tpu.memory_space<vmem>>, %arg5: memref<256x128xf32, #tpu.memory_space<vmem>>) attributes {dimension_semantics = [#tpu.dimension_semantics<parallel>], iteration_bounds = array<i64: 2>, scalar_prefetch = 0 : i64, scratch_operands = 0 : i64, tpu.core_type = #tpu.core_type<tc>, window_params = [{transform_indices = @transform_0, window_bounds = array<i64: 256, 16>}, {pipeline_mode = #tpu.pipeline_mode<synchronous>, transform_indices = @transform_1, window_bounds = array<i64: 16, 128>}, {pipeline_mode = #tpu.pipeline_mode<synchronous>, transform_indices = @transform_2, window_bounds = array<i64: 128, 128>}, {transform_indices = @transform_3, window_bounds = array<i64: 256, 128>}, {transform_indices = @transform_4, window_bounds = array<i64: 256, 128>}]} {
    %c0 = arith.constant 0 : index
    %c0_0 = arith.constant 0 : index
    %0 = vector.load %arg1[%c0, %c0_0] : memref<256x16xf32, #tpu.memory_space<vmem>>, vector<256x16xf32>
    %c0_1 = arith.constant 0 : index
    %c0_2 = arith.constant 0 : index
    %1 = vector.load %arg2[%c0_1, %c0_2] : memref<16x128xf32, #tpu.memory_space<vmem>>, vector<16x128xf32>
    %cst = arith.constant dense<0.000000e+00> : vector<256x128xf32>
    %2 = tpu.matmul %0, %1, %cst {dimension_numbers = #tpu.dot_dimension_numbers<[1], [0], [0], [1], [0, 0, 1, 1], [], []>} : vector<256x16xf32>, vector<16x128xf32>, vector<256x128xf32> -> vector<256x128xf32>
    %3 = arith.truncf %2 : vector<256x128xf32> to vector<256x128xbf16>
    %c0_3 = arith.constant 0 : index
    %c0_4 = arith.constant 0 : index
    %4 = vector.load %arg4[%c0_3, %c0_4] : memref<256x128xbf16, #tpu.memory_space<vmem>>, vector<256x128xbf16>
    tpu.vector_store %arg4[%c0_3, %c0_4], %3 {strides = array<i32>} : memref<256x128xbf16, #tpu.memory_space<vmem>>, vector<256x128xbf16>,
    %c0_5 = arith.constant 0 : index
    %c0_6 = arith.constant 0 : index
    %5 = vector.load %arg3[%c0_5, %c0_6] : memref<128x128xf32, #tpu.memory_space<vmem>>, vector<128x128xf32>
    %cst_7 = arith.constant dense<0.000000e+00> : vector<256x128xf32>
    %6 = tpu.matmul %2, %5, %cst_7 {dimension_numbers = #tpu.dot_dimension_numbers<[1], [0], [0], [1], [0, 0, 1, 1], [], []>} : vector<256x128xf32>, vector<128x128xf32>, vector<256x128xf32> -> vector<256x128xf32>
    %c0_8 = arith.constant 0 : index
    %c0_9 = arith.constant 0 : index
    %7 = vector.load %arg5[%c0_8, %c0_9] : memref<256x128xf32, #tpu.memory_space<vmem>>, vector<256x128xf32>
    tpu.vector_store %arg5[%c0_8, %c0_9], %6 {strides = array<i32>} : memref<256x128xf32, #tpu.memory_space<vmem>>, vector<256x128xf32>,
    return
  }
  func.func @transform_0(%arg0: i32) -> (i32, i32) {
    %c0_i32 = arith.constant 0 : i32
    %c0_i32_0 = arith.constant 0 : i32
    return %arg0, %c0_i32 : i32, i32
  }
  func.func @transform_1(%arg0: i32) -> (i32, i32) {
    %c0_i32 = arith.constant 0 : i32
    %c0_i32_0 = arith.constant 0 : i32
    %c0_i32_1 = arith.constant 0 : i32
    return %c0_i32, %c0_i32_0 : i32, i32
  }
  func.func @transform_2(%arg0: i32) -> (i32, i32) {
    %c0_i32 = arith.constant 0 : i32
    %c0_i32_0 = arith.constant 0 : i32
    %c0_i32_1 = arith.constant 0 : i32
    return %c0_i32, %c0_i32_0 : i32, i32
  }
  func.func @transform_3(%arg0: i32) -> (i32, i32) {
    %c0_i32 = arith.constant 0 : i32
    %c0_i32_0 = arith.constant 0 : i32
    return %arg0, %c0_i32 : i32, i32
  }
  func.func @transform_4(%arg0: i32) -> (i32, i32) {
    %c0_i32 = arith.constant 0 : i32
    %c0_i32_0 = arith.constant 0 : i32
    return %arg0, %c0_i32 : i32, i32
  }
}

</mosaic_0001>

<llo_original>
// kernel: tpu_custom_call.1
$region0: #{tpu_custom_call.1}
  #allocation0 [shape = 'u32[]', space=smem, size = 0x4, offset = 0x4, fixed_abs, tag = 'smem constant byte address 0x4 - core index']
  #allocation1 [shape = 'u32[72,128]{1,0:T(1,128)}', space=vmem, size = 0x9000, scoped, tag = 'internal scratch']
  %s0 = inlined_call_operand.vmem [shape: f32[512,16], index: 0, kind: input, shape index: {}]
  %s1 = inlined_call_operand.vmem [shape: f32[16,128], index: 1, kind: input, shape index: {}]
  %s2 = inlined_call_operand.vmem [shape: f32[128,128], index: 2, kind: input, shape index: {}]
  %s3 = inlined_call_operand.hbm [shape: bf16[512,128], index: 3, kind: output, shape index: {0}]
  %s4 = inlined_call_operand.hbm [shape: f32[512,128], index: 4, kind: output, shape index: {1}]
  %5 = xla_tuple %s3, %s4
  %s6 = sld [smem:[#allocation0]]
  $region53: #{tpu_custom_call.1} parent=0
    _
  %s8 = ssub.s32 1, %s6
  %s9 = scalar_select 0, %s8, %s6
  $region1: #{tpu_custom_call.1} parent=0
    #allocation2 [shape = 'u8[131072]{0}', space=vmem, size = 0x20000, scoped, tag = 'output window, operand 0']
    #allocation3 [shape = 's32[2]{0}', space=sflag, size = 0x8, scoped, tag = 'scoped memory for tpu_custom_call.1']
    #allocation4 [shape = 'u8[262144]{0}', space=vmem, size = 0x40000, scoped, tag = 'output window, operand 1']
    #allocation5 [shape = 's32[2]{0}', space=sflag, size = 0x8, scoped, tag = 'scoped memory for tpu_custom_call.1']
    %10 = vsyncpa [#allocation3], 0
    %s11 = scalar_lea.sflag [#allocation3], 1
    %12 = vsyncpa %s11, 0
    %13 = vsyncpa [#allocation5], 0
    %s14 = scalar_lea.sflag [#allocation5], 1
    %15 = vsyncpa %s14, 0
    loop: start=0, step=1, limit=4
    $region2: #{tpu_custom_call.1} parent=1 // loop_pre_header
      _
    $region3: #{tpu_custom_call.1} parent=1 // loop_header
      %s17 = sphi 0, %s21
      %p18 = scmp.ge.s32.totalorder %s17, 4
      %s27 = sphi 0, %s29
      %s30 = sphi 0, %s27
      %s31 = sphi 0, %s30
      %s47 = sphi 0, %s31
      %s51 = sphi 0, %s51
      %s53 = sphi 0, %s51
      %s54 = sphi 0, %s53
      %s68 = sphi 0, %s54
      %s72 = sphi 0, %s72
      %s74 = sphi 0, %s72
      %s75 = sphi 0, %s74
      %s89 = sphi 0, %s75
      %s95 = sphi 0, %s97
      %s98 = sphi 0, %s95
      %s99 = sphi 0, %s98
      %s115 = sphi 0, %s99
      %s121 = sphi 0, %s123
      %s124 = sphi 0, %s121
      %s125 = sphi 0, %s124
      %s141 = sphi 0, %s125
    $region4: #{tpu_custom_call.1} parent=1 // loop_header_branch
      %20 = sbr.rel (%p18) target = $region8
    $region5: #{tpu_custom_call.1} parent=1 // loop_body
      %s22 = ssub.s32 %s17, 1
      %s23 = ssub.s32 %s17, 2
      %s24 = sadd.s32 %s17, 1
      %s25 = ssub.s32 %s17, %s24
      %p26 = scmp.eq.s32.totalorder %s25, 0
      %s28 = sadd.s32 %s27, 1
      %s29 = scalar_select %p26, %s27, %s28
      %p32 = pneg %p26
      %p33 = scmp.eq.s32.totalorder %s17, 1
      %p34 = por %p32, %p33
      %p35 = scmp.ne.s32.totalorder %s27, %s30
      %p36 = scmp.eq.s32.totalorder %s17, 0
      %p37 = por %p35, %p36
      %p38 = scmp.ne.s32.totalorder %s27, %s30
      %p39 = scmp.eq.s32.totalorder %s22, 1
      %p40 = por %p38, %p39
      %p41 = scmp.ne.s32.totalorder %s30, %s31
      %p42 = scmp.eq.s32.totalorder %s22, 0
      %p43 = por %p41, %p42
      %p44 = scmp.ne.s32.totalorder %s30, %s31
      %p45 = scmp.eq.s32.totalorder %s23, 1
      %p46 = por %p44, %p45
      %p48 = scmp.ne.s32.totalorder %s31, %s47
      %p49 = scmp.eq.s32.totalorder %s23, 0
      %p50 = por %p48, %p49
      %s52 = sadd.s32 %s51, 1
      %p55 = scmp.eq.s32.totalorder %s17, 1
      %p56 = scmp.ne.s32.totalorder %s51, %s53
      %p57 = scmp.eq.s32.totalorder %s17, 0
      %p58 = por %p56, %p57
      %p59 = scmp.ne.s32.totalorder %s51, %s53
      %p60 = scmp.eq.s32.totalorder %s22, 1
      %p61 = por %p59, %p60
      %p62 = scmp.ne.s32.totalorder %s53, %s54
      %p63 = scmp.eq.s32.totalorder %s22, 0
      %p64 = por %p62, %p63
      %p65 = scmp.ne.s32.totalorder %s53, %s54
      %p66 = scmp.eq.s32.totalorder %s23, 1
      %p67 = por %p65, %p66
      %p69 = scmp.ne.s32.totalorder %s54, %s68
      %p70 = scmp.eq.s32.totalorder %s23, 0
      %p71 = por %p69, %p70
      %s73 = sadd.s32 %s72, 1
      %p76 = scmp.eq.s32.totalorder %s17, 1
      %p77 = scmp.ne.s32.totalorder %s72, %s74
      %p78 = scmp.eq.s32.totalorder %s17, 0
      %p79 = por %p77, %p78
      %p80 = scmp.ne.s32.totalorder %s72, %s74
      %p81 = scmp.eq.s32.totalorder %s22, 1
      %p82 = por %p80, %p81
      %p83 = scmp.ne.s32.totalorder %s74, %s75
      %p84 = scmp.eq.s32.totalorder %s22, 0
      %p85 = por %p83, %p84
      %p86 = scmp.ne.s32.totalorder %s74, %s75
      %p87 = scmp.eq.s32.totalorder %s23, 1
      %p88 = por %p86, %p87
      %p90 = scmp.ne.s32.totalorder %s75, %s89
      %p91 = scmp.eq.s32.totalorder %s23, 0
      %p92 = por %p90, %p91
      %s93 = ssub.s32 %s17, %s24
      %p94 = scmp.eq.s32.totalorder %s93, 0
      %s96 = sadd.s32 %s95, 1
      %s97 = scalar_select %p94, %s95, %s96
      %p100 = pneg %p94
      %p101 = scmp.eq.s32.totalorder %s17, 1
      %p102 = por %p100, %p101
      %p103 = scmp.ne.s32.totalorder %s95, %s98
      %p104 = scmp.eq.s32.totalorder %s17, 0
      %p105 = por %p103, %p104
      %p106 = scmp.ne.s32.totalorder %s95, %s98
      %p107 = scmp.eq.s32.totalorder %s22, 1
      %p108 = por %p106, %p107
      %p109 = scmp.ne.s32.totalorder %s98, %s99
      %p110 = scmp.eq.s32.totalorder %s22, 0
      %p111 = por %p109, %p110
      %p112 = scmp.ne.s32.totalorder %s98, %s99
      %p113 = scmp.eq.s32.totalorder %s23, 1
      %p114 = por %p112, %p113
      %p116 = scmp.ne.s32.totalorder %s99, %s115
      %p117 = scmp.eq.s32.totalorder %s23, 0
      %p118 = por %p116, %p117
      %s119 = ssub.s32 %s17, %s24
      %p120 = scmp.eq.s32.totalorder %s119, 0
      %s122 = sadd.s32 %s121, 1
      %s123 = scalar_select %p120, %s121, %s122
      %p126 = pneg %p120
      %p127 = scmp.eq.s32.totalorder %s17, 1
      %p128 = por %p126, %p127
      %p129 = scmp.ne.s32.totalorder %s121, %s124
      %p130 = scmp.eq.s32.totalorder %s17, 0
      %p131 = por %p129, %p130
      %p132 = scmp.ne.s32.totalorder %s121, %s124
      %p133 = scmp.eq.s32.totalorder %s22, 1
      %p134 = por %p132, %p133
      %p135 = scmp.ne.s32.totalorder %s124, %s125
      %p136 = scmp.eq.s32.totalorder %s22, 0
      %p137 = por %p135, %p136
      %p138 = scmp.ne.s32.totalorder %s124, %s125
      %p139 = scmp.eq.s32.totalorder %s23, 1
      %p140 = por %p138, %p139
      %p142 = scmp.ne.s32.totalorder %s125, %s141
      %p143 = scmp.eq.s32.totalorder %s23, 0
      %p144 = por %p142, %p143
      %p145 = scmp.le.s32.totalorder 1, %s17
      %p146 = scmp.lt.s32.totalorder %s17, 3
      %p147 = pnand %p145, %p146
      %p148 = pneg %p147
      // Predicated region
      $region9: #{tpu_custom_call.1} parent=5 // pred_check
        _
      $region10: #{tpu_custom_call.1} parent=5 // pred_check_branch
        %150 = sbr.rel (%p147) target = $region12
      $region11: #{tpu_custom_call.1} parent=5 // pred_region
        %s151 = ssub.s32 %s17, 1
        // Predicated region
        $region13: #{tpu_custom_call.1} parent=11 // pred_check
          %p152 = pneg %p64
        $region14: #{tpu_custom_call.1} parent=11 // pred_check_branch
          %154 = sbr.rel (%p152) target = $region16
        $region15: #{tpu_custom_call.1} parent=11 // pred_region
          _
        $region16: #{tpu_custom_call.1} parent=11 // pred_fallthru
          _
        // Predicated region
        $region17: #{tpu_custom_call.1} parent=11 // pred_check
          %p155 = pneg %p85
        $region18: #{tpu_custom_call.1} parent=11 // pred_check_branch
          %157 = sbr.rel (%p155) target = $region20
        $region19: #{tpu_custom_call.1} parent=11 // pred_region
          _
        $region20: #{tpu_custom_call.1} parent=11 // pred_fallthru
          _
      $region12: #{tpu_custom_call.1} parent=5 // pred_fallthru
        _
      %p158 = scmp.lt.s32.totalorder %s17, 2
      // Predicated region
      $region21: #{tpu_custom_call.1} parent=5 // pred_check
        %p159 = pneg %p158
      $region22: #{tpu_custom_call.1} parent=5 // pred_check_branch
        %161 = sbr.rel (%p159) target = $region24
      $region23: #{tpu_custom_call.1} parent=5 // pred_region
        // Predicated region
        $region25: #{tpu_custom_call.1} parent=23 // pred_check
          %p162 = pneg %p37
        $region26: #{tpu_custom_call.1} parent=23 // pred_check_branch
          %164 = sbr.rel (%p162) target = $region28
        $region27: #{tpu_custom_call.1} parent=23 // pred_region
          %s165 = smul.u32 32, %s17
          %p166 = scmp.lt.s32.totalorder %s165, 63
          %s167 = scalar_select %p166, %s165, 63
          %s168 = smul.addr %s167, 8
          %s169 = scalar_lea.vmem %s0, %s168
          %s170 = smul.u32 32, %s17
        $region28: #{tpu_custom_call.1} parent=23 // pred_fallthru
          _
      $region24: #{tpu_custom_call.1} parent=5 // pred_fallthru
        _
      %p171 = scmp.le.s32.totalorder 1, %s17
      %p172 = scmp.lt.s32.totalorder %s17, 3
      %p173 = pnand %p171, %p172
      %p174 = pneg %p173
      // Predicated region
      $region29: #{tpu_custom_call.1} parent=5 // pred_check
        _
      $region30: #{tpu_custom_call.1} parent=5 // pred_check_branch
        %176 = sbr.rel (%p173) target = $region32
      $region31: #{tpu_custom_call.1} parent=5 // pred_region
        %s177 = ssub.s32 %s17, 1
        %s178 = smul.u32 32, %s22
        %p179 = scmp.lt.s32.totalorder %s178, 63
        %s180 = scalar_select %p179, %s178, 63
        %s181 = smul.addr %s180, 8
        %s182 = scalar_lea.vmem %s0, %s181
        %p183 = pneg %p43
        %p184 = pneg %p40
        %p185 = pneg %p64
        %p186 = pneg %p61
        %p187 = pneg %p85
        %p188 = pneg %p82
        %p189 = pneg %p111
        %p190 = pneg %p108
        %s191 = sand.u32 %s98, 1
        %s192 = scalar_lea.sflag [#allocation3], %s191
        %s193 = sand.u32 %s98, 1
        %s194 = smul.addr %s193, 128
        %s195 = scalar_lea.vmem [#allocation2], %s194
        %p196 = pneg %p137
        %p197 = pneg %p134
        %s198 = sand.u32 %s124, 1
        %s199 = scalar_lea.sflag [#allocation5], %s198
        %s200 = sand.u32 %s124, 1
        %s201 = smul.addr %s200, 256
        %s202 = scalar_lea.vmem [#allocation4], %s201
        %s203 = smul.u32 32, %s22
        %p204 = scmp.lt.s32.totalorder %s203, 63
        %s205 = scalar_select %p204, %s203, 63
        %s206 = smul.addr %s205, 8
        %s207 = scalar_lea.vmem %s0, %s206
        %s208 = smul.u32 32, %s22
        %s209 = smul.u32 32, %s22
        %s210 = smul.u32 32, %s22
        %v211 = vld [vmem:[%s207] sm:$0xff]
        %v212 = vld [vmem:[%s207 + $0x8] sm:$0xff]
        %v213 = vld [vmem:[%s207 + $0x10] sm:$0xff]
        %v214 = vld [vmem:[%s207 + $0x18] sm:$0xff]
        %v215 = vld [vmem:[%s207 + $0x20] sm:$0xff]
        %v216 = vld [vmem:[%s207 + $0x28] sm:$0xff]
        %v217 = vld [vmem:[%s207 + $0x30] sm:$0xff]
        %v218 = vld [vmem:[%s207 + $0x38] sm:$0xff]
        %v219 = vld [vmem:[%s207 + $0x40] sm:$0xff]
        %v220 = vld [vmem:[%s207 + $0x48] sm:$0xff]
        %v221 = vld [vmem:[%s207 + $0x50] sm:$0xff]
        %v222 = vld [vmem:[%s207 + $0x58] sm:$0xff]
        %v223 = vld [vmem:[%s207 + $0x60] sm:$0xff]
        %v224 = vld [vmem:[%s207 + $0x68] sm:$0xff]
        %v225 = vld [vmem:[%s207 + $0x70] sm:$0xff]
        %v226 = vld [vmem:[%s207 + $0x78] sm:$0xff]
        %v227 = vld [vmem:[%s207 + $0x80] sm:$0xff]
        %v228 = vld [vmem:[%s207 + $0x88] sm:$0xff]
        %v229 = vld [vmem:[%s207 + $0x90] sm:$0xff]
        %v230 = vld [vmem:[%s207 + $0x98] sm:$0xff]
        %v231 = vld [vmem:[%s207 + $0xa0] sm:$0xff]
        %v232 = vld [vmem:[%s207 + $0xa8] sm:$0xff]
        %v233 = vld [vmem:[%s207 + $0xb0] sm:$0xff]
        %v234 = vld [vmem:[%s207 + $0xb8] sm:$0xff]
        %v235 = vld [vmem:[%s207 + $0xc0] sm:$0xff]
        %v236 = vld [vmem:[%s207 + $0xc8] sm:$0xff]
        %v237 = vld [vmem:[%s207 + $0xd0] sm:$0xff]
        %v238 = vld [vmem:[%s207 + $0xd8] sm:$0xff]
        %v239 = vld [vmem:[%s207 + $0xe0] sm:$0xff]
        %v240 = vld [vmem:[%s207 + $0xe8] sm:$0xff]
        %v241 = vld [vmem:[%s207 + $0xf0] sm:$0xff]
        %v242 = vld [vmem:[%s207 + $0xf8] sm:$0xff]
        %v243 = vld [vmem:[%s1] sm:$0xff]
        %v244 = vld [vmem:[%s1 + $0x8] sm:$0xff]
        %vm245 = vcmask 130048
        %v247 = vsel %vm245, %v211, 0
        %v250 = vsel %vm245, %v212, 0
        %v253 = vsel %vm245, %v213, 0
        %v256 = vsel %vm245, %v214, 0
        %v259 = vsel %vm245, %v215, 0
        %v262 = vsel %vm245, %v216, 0
        %v265 = vsel %vm245, %v217, 0
        %v268 = vsel %vm245, %v218, 0
        %v271 = vsel %vm245, %v219, 0
        %v274 = vsel %vm245, %v220, 0
        %v277 = vsel %vm245, %v221, 0
        %v280 = vsel %vm245, %v222, 0
        %v283 = vsel %vm245, %v223, 0
        %v286 = vsel %vm245, %v224, 0
        %v289 = vsel %vm245, %v225, 0
        %v292 = vsel %vm245, %v226, 0
        %v295 = vsel %vm245, %v227, 0
        %v298 = vsel %vm245, %v228, 0
        %v301 = vsel %vm245, %v229, 0
        %v304 = vsel %vm245, %v230, 0
        %v307 = vsel %vm245, %v231, 0
        %v310 = vsel %vm245, %v232, 0
        %v313 = vsel %vm245, %v233, 0
        %v316 = vsel %vm245, %v234, 0
        %v319 = vsel %vm245, %v235, 0
        %v322 = vsel %vm245, %v236, 0
        %v325 = vsel %vm245, %v237, 0
        %v328 = vsel %vm245, %v238, 0
        %v331 = vsel %vm245, %v239, 0
        %v334 = vsel %vm245, %v240, 0
        %v337 = vsel %vm245, %v241, 0
        %v340 = vsel %vm245, %v242, 0
        %342 = vmatpush.msra.mxu0 0.0
        %343 = vmatpush.msra.mxu0 0.0
        %344 = vmatpush.msra.mxu0 0.0
        %345 = vmatpush.msra.mxu0 0.0
        %346 = vmatpush.msra.mxu0 0.0
        %347 = vmatpush.msra.mxu0 0.0
        %348 = vmatpush.msra.mxu0 0.0
        %349 = vmatpush.msra.mxu0 0.0
        %350 = vmatpush.msra.mxu0 0.0
        %351 = vmatpush.msra.mxu0 0.0
        %352 = vmatpush.msra.mxu0 0.0
        %353 = vmatpush.msra.mxu0 0.0
        %354 = vmatpush.msra.mxu0 0.0
        %355 = vmatpush.msra.mxu0 0.0
        %356 = vmatpush.msra.mxu0 %v244
        %357 = vmatpush.msra.mxu0 %v243
        %358 = vmatmul.f32.gmra.mxu0 %v247
        %v359 = vpop.f32.mrf.mxu0
        %v360 = vadd.f32 0.0, %v359
        %361 = vmatmul.f32.gmra.mxu0 %v250
        %v362 = vpop.f32.mrf.mxu0
        %v363 = vadd.f32 0.0, %v362
        %364 = vmatmul.f32.gmra.mxu0 %v253
        %v365 = vpop.f32.mrf.mxu0
        %v366 = vadd.f32 0.0, %v365
        %367 = vmatmul.f32.gmra.mxu0 %v256
        %v368 = vpop.f32.mrf.mxu0
        %v369 = vadd.f32 0.0, %v368
        %370 = vmatmul.f32.gmra.mxu0 %v259
        %v371 = vpop.f32.mrf.mxu0
        %v372 = vadd.f32 0.0, %v371
        %373 = vmatmul.f32.gmra.mxu0 %v262
        %v374 = vpop.f32.mrf.mxu0
        %v375 = vadd.f32 0.0, %v374
        %376 = vmatmul.f32.gmra.mxu0 %v265
        %v377 = vpop.f32.mrf.mxu0
        %v378 = vadd.f32 0.0, %v377
        %379 = vmatmul.f32.gmra.mxu0 %v268
        %v380 = vpop.f32.mrf.mxu0
        %v381 = vadd.f32 0.0, %v380
        %382 = vmatmul.f32.gmra.mxu0 %v271
        %v383 = vpop.f32.mrf.mxu0
        %v384 = vadd.f32 0.0, %v383
        %385 = vmatmul.f32.gmra.mxu0 %v274
        %v386 = vpop.f32.mrf.mxu0
        %v387 = vadd.f32 0.0, %v386
        %388 = vmatmul.f32.gmra.mxu0 %v277
        %v389 = vpop.f32.mrf.mxu0
        %v390 = vadd.f32 0.0, %v389
        %391 = vmatmul.f32.gmra.mxu0 %v280
        %v392 = vpop.f32.mrf.mxu0
        %v393 = vadd.f32 0.0, %v392
        %394 = vmatmul.f32.gmra.mxu0 %v283
        %v395 = vpop.f32.mrf.mxu0
        %v396 = vadd.f32 0.0, %v395
        %397 = vmatmul.f32.gmra.mxu0 %v286
        %v398 = vpop.f32.mrf.mxu0
        %v399 = vadd.f32 0.0, %v398
        %400 = vmatmul.f32.gmra.mxu0 %v289
        %v401 = vpop.f32.mrf.mxu0
        %v402 = vadd.f32 0.0, %v401
        %403 = vmatmul.f32.gmra.mxu0 %v292
        %v404 = vpop.f32.mrf.mxu0
        %v405 = vadd.f32 0.0, %v404
        %406 = vmatmul.f32.gmra.mxu0 %v295
        %v407 = vpop.f32.mrf.mxu0
        %v408 = vadd.f32 0.0, %v407
        %409 = vmatmul.f32.gmra.mxu0 %v298
        %v410 = vpop.f32.mrf.mxu0
        %v411 = vadd.f32 0.0, %v410
        %412 = vmatmul.f32.gmra.mxu0 %v301
        %v413 = vpop.f32.mrf.mxu0
        %v414 = vadd.f32 0.0, %v413
        %415 = vmatmul.f32.gmra.mxu0 %v304
        %v416 = vpop.f32.mrf.mxu0
        %v417 = vadd.f32 0.0, %v416
        %418 = vmatmul.f32.gmra.mxu0 %v307
        %v419 = vpop.f32.mrf.mxu0
        %v420 = vadd.f32 0.0, %v419
        %421 = vmatmul.f32.gmra.mxu0 %v310
        %v422 = vpop.f32.mrf.mxu0
        %v423 = vadd.f32 0.0, %v422
        %424 = vmatmul.f32.gmra.mxu0 %v313
        %v425 = vpop.f32.mrf.mxu0
        %v426 = vadd.f32 0.0, %v425
        %427 = vmatmul.f32.gmra.mxu0 %v316
        %v428 = vpop.f32.mrf.mxu0
        %v429 = vadd.f32 0.0, %v428
        %430 = vmatmul.f32.gmra.mxu0 %v319
        %v431 = vpop.f32.mrf.mxu0
        %v432 = vadd.f32 0.0, %v431
        %433 = vmatmul.f32.gmra.mxu0 %v322
        %v434 = vpop.f32.mrf.mxu0
        %v435 = vadd.f32 0.0, %v434
        %436 = vmatmul.f32.gmra.mxu0 %v325
        %v437 = vpop.f32.mrf.mxu0
        %v438 = vadd.f32 0.0, %v437
        %439 = vmatmul.f32.gmra.mxu0 %v328
        %v440 = vpop.f32.mrf.mxu0
        %v441 = vadd.f32 0.0, %v440
        %442 = vmatmul.f32.gmra.mxu0 %v331
        %v443 = vpop.f32.mrf.mxu0
        %v444 = vadd.f32 0.0, %v443
        %445 = vmatmul.f32.gmra.mxu0 %v334
        %v446 = vpop.f32.mrf.mxu0
        %v447 = vadd.f32 0.0, %v446
        %448 = vmatmul.f32.gmra.mxu0 %v337
        %v449 = vpop.f32.mrf.mxu0
        %v450 = vadd.f32 0.0, %v449
        %451 = vmatmul.f32.gmra.mxu0 %v340
        %v452 = vpop.f32.mrf.mxu0
        %v453 = vadd.f32 0.0, %v452
        %454 = vdwg.mxu0
        %v455 = vpack.c.bf16 %v360, %v360
        %v456 = vpack.c.bf16 %v363, %v363
        %v457 = vpack.c.bf16 %v366, %v366
        %v458 = vpack.c.bf16 %v369, %v369
        %v459 = vpack.c.bf16 %v372, %v372
        %v460 = vpack.c.bf16 %v375, %v375
        %v461 = vpack.c.bf16 %v378, %v378
        %v462 = vpack.c.bf16 %v381, %v381
        %v463 = vpack.c.bf16 %v384, %v384
        %v464 = vpack.c.bf16 %v387, %v387
        %v465 = vpack.c.bf16 %v390, %v390
        %v466 = vpack.c.bf16 %v393, %v393
        %v467 = vpack.c.bf16 %v396, %v396
        %v468 = vpack.c.bf16 %v399, %v399
        %v469 = vpack.c.bf16 %v402, %v402
        %v470 = vpack.c.bf16 %v405, %v405
        %v471 = vpack.c.bf16 %v408, %v408
        %v472 = vpack.c.bf16 %v411, %v411
        %v473 = vpack.c.bf16 %v414, %v414
        %v474 = vpack.c.bf16 %v417, %v417
        %v475 = vpack.c.bf16 %v420, %v420
        %v476 = vpack.c.bf16 %v423, %v423
        %v477 = vpack.c.bf16 %v426, %v426
        %v478 = vpack.c.bf16 %v429, %v429
        %v479 = vpack.c.bf16 %v432, %v432
        %v480 = vpack.c.bf16 %v435, %v435
        %v481 = vpack.c.bf16 %v438, %v438
        %v482 = vpack.c.bf16 %v441, %v441
        %v483 = vpack.c.bf16 %v444, %v444
        %v484 = vpack.c.bf16 %v447, %v447
        %v485 = vpack.c.bf16 %v450, %v450
        %v486 = vpack.c.bf16 %v453, %v453
        %487 = vst [vmem:[%s195] sm:$0xf] %v455
        %488 = vst [vmem:[%s195 + $0x4] sm:$0xf] %v456
        %489 = vst [vmem:[%s195 + $0x8] sm:$0xf] %v457
        %490 = vst [vmem:[%s195 + $0xc] sm:$0xf] %v458
        %491 = vst [vmem:[%s195 + $0x10] sm:$0xf] %v459
        %492 = vst [vmem:[%s195 + $0x14] sm:$0xf] %v460
        %493 = vst [vmem:[%s195 + $0x18] sm:$0xf] %v461
        %494 = vst [vmem:[%s195 + $0x1c] sm:$0xf] %v462
        %495 = vst [vmem:[%s195 + $0x20] sm:$0xf] %v463
        %496 = vst [vmem:[%s195 + $0x24] sm:$0xf] %v464
        %497 = vst [vmem:[%s195 + $0x28] sm:$0xf] %v465
        %498 = vst [vmem:[%s195 + $0x2c] sm:$0xf] %v466
        %499 = vst [vmem:[%s195 + $0x30] sm:$0xf] %v467
        %500 = vst [vmem:[%s195 + $0x34] sm:$0xf] %v468
        %501 = vst [vmem:[%s195 + $0x38] sm:$0xf] %v469
        %502 = vst [vmem:[%s195 + $0x3c] sm:$0xf] %v470
        %503 = vst [vmem:[%s195 + $0x40] sm:$0xf] %v471
        %504 = vst [vmem:[%s195 + $0x44] sm:$0xf] %v472
        %505 = vst [vmem:[%s195 + $0x48] sm:$0xf] %v473
        %506 = vst [vmem:[%s195 + $0x4c] sm:$0xf] %v474
        %507 = vst [vmem:[%s195 + $0x50] sm:$0xf] %v475
        %508 = vst [vmem:[%s195 + $0x54] sm:$0xf] %v476
        %509 = vst [vmem:[%s195 + $0x58] sm:$0xf] %v477
        %510 = vst [vmem:[%s195 + $0x5c] sm:$0xf] %v478
        %511 = vst [vmem:[%s195 + $0x60] sm:$0xf] %v479
        %512 = vst [vmem:[%s195 + $0x64] sm:$0xf] %v480
        %513 = vst [vmem:[%s195 + $0x68] sm:$0xf] %v481
        %514 = vst [vmem:[%s195 + $0x6c] sm:$0xf] %v482
        %515 = vst [vmem:[%s195 + $0x70] sm:$0xf] %v483
        %516 = vst [vmem:[%s195 + $0x74] sm:$0xf] %v484
        %517 = vst [vmem:[%s195 + $0x78] sm:$0xf] %v485
        %518 = vst [vmem:[%s195 + $0x7c] sm:$0xf] %v486
        %v519 = vld [vmem:[%s2] sm:$0xff]
        %v520 = vld [vmem:[%s2 + $0x8] sm:$0xff]
        %v521 = vld [vmem:[%s2 + $0x10] sm:$0xff]
        %v522 = vld [vmem:[%s2 + $0x18] sm:$0xff]
        %v523 = vld [vmem:[%s2 + $0x20] sm:$0xff]
        %v524 = vld [vmem:[%s2 + $0x28] sm:$0xff]
        %v525 = vld [vmem:[%s2 + $0x30] sm:$0xff]
        %v526 = vld [vmem:[%s2 + $0x38] sm:$0xff]
        %v527 = vld [vmem:[%s2 + $0x40] sm:$0xff]
        %v528 = vld [vmem:[%s2 + $0x48] sm:$0xff]
        %v529 = vld [vmem:[%s2 + $0x50] sm:$0xff]
        %v530 = vld [vmem:[%s2 + $0x58] sm:$0xff]
        %v531 = vld [vmem:[%s2 + $0x60] sm:$0xff]
        %v532 = vld [vmem:[%s2 + $0x68] sm:$0xff]
        %v533 = vld [vmem:[%s2 + $0x70] sm:$0xff]
        %v534 = vld [vmem:[%s2 + $0x78] sm:$0xff]
        %535 = vmatpush.msra.mxu0 %v534
        %536 = vmatpush.msra.mxu0 %v533
        %537 = vmatpush.msra.mxu0 %v532
        %538 = vmatpush.msra.mxu0 %v531
        %539 = vmatpush.msra.mxu0 %v530
        %540 = vmatpush.msra.mxu0 %v529
        %541 = vmatpush.msra.mxu0 %v528
        %542 = vmatpush.msra.mxu0 %v527
        %543 = vmatpush.msra.mxu0 %v526
        %544 = vmatpush.msra.mxu0 %v525
        %545 = vmatpush.msra.mxu0 %v524
        %546 = vmatpush.msra.mxu0 %v523
        %547 = vmatpush.msra.mxu0 %v522
        %548 = vmatpush.msra.mxu0 %v521
        %549 = vmatpush.msra.mxu0 %v520
        %550 = vmatpush.msra.mxu0 %v519
        %551 = vmatmul.f32.gmra.mxu0 %v360
        %v552 = vpop.f32.mrf.mxu0
        %v553 = vadd.f32 0.0, %v552
        %554 = vmatmul.f32.gmra.mxu0 %v363
        %v555 = vpop.f32.mrf.mxu0
        %v556 = vadd.f32 0.0, %v555
        %557 = vmatmul.f32.gmra.mxu0 %v366
        %v558 = vpop.f32.mrf.mxu0
        %v559 = vadd.f32 0.0, %v558
        %560 = vmatmul.f32.gmra.mxu0 %v369
        %v561 = vpop.f32.mrf.mxu0
        %v562 = vadd.f32 0.0, %v561
        %563 = vmatmul.f32.gmra.mxu0 %v372
        %v564 = vpop.f32.mrf.mxu0
        %v565 = vadd.f32 0.0, %v564
        %566 = vmatmul.f32.gmra.mxu0 %v375
        %v567 = vpop.f32.mrf.mxu0
        %v568 = vadd.f32 0.0, %v567
        %569 = vmatmul.f32.gmra.mxu0 %v378
        %v570 = vpop.f32.mrf.mxu0
        %v571 = vadd.f32 0.0, %v570
        %572 = vmatmul.f32.gmra.mxu0 %v381
        %v573 = vpop.f32.mrf.mxu0
        %v574 = vadd.f32 0.0, %v573
        %575 = vmatmul.f32.gmra.mxu0 %v384
        %v576 = vpop.f32.mrf.mxu0
        %v577 = vadd.f32 0.0, %v576
        %578 = vmatmul.f32.gmra.mxu0 %v387
        %v579 = vpop.f32.mrf.mxu0
        %v580 = vadd.f32 0.0, %v579
        %581 = vmatmul.f32.gmra.mxu0 %v390
        %v582 = vpop.f32.mrf.mxu0
        %v583 = vadd.f32 0.0, %v582
        %584 = vmatmul.f32.gmra.mxu0 %v393
        %v585 = vpop.f32.mrf.mxu0
        %v586 = vadd.f32 0.0, %v585
        %587 = vmatmul.f32.gmra.mxu0 %v396
        %v588 = vpop.f32.mrf.mxu0
        %v589 = vadd.f32 0.0, %v588
        %590 = vmatmul.f32.gmra.mxu0 %v399
        %v591 = vpop.f32.mrf.mxu0
        %v592 = vadd.f32 0.0, %v591
        %593 = vmatmul.f32.gmra.mxu0 %v402
        %v594 = vpop.f32.mrf.mxu0
        %v595 = vadd.f32 0.0, %v594
        %596 = vmatmul.f32.gmra.mxu0 %v405
        %v597 = vpop.f32.mrf.mxu0
        %v598 = vadd.f32 0.0, %v597
        %599 = vmatmul.f32.gmra.mxu0 %v408
        %v600 = vpop.f32.mrf.mxu0
        %v601 = vadd.f32 0.0, %v600
        %602 = vmatmul.f32.gmra.mxu0 %v411
        %v603 = vpop.f32.mrf.mxu0
        %v604 = vadd.f32 0.0, %v603
        %605 = vmatmul.f32.gmra.mxu0 %v414
        %v606 = vpop.f32.mrf.mxu0
        %v607 = vadd.f32 0.0, %v606
        %608 = vmatmul.f32.gmra.mxu0 %v417
        %v609 = vpop.f32.mrf.mxu0
        %v610 = vadd.f32 0.0, %v609
        %611 = vmatmul.f32.gmra.mxu0 %v420
        %v612 = vpop.f32.mrf.mxu0
        %v613 = vadd.f32 0.0, %v612
        %614 = vmatmul.f32.gmra.mxu0 %v423
        %v615 = vpop.f32.mrf.mxu0
        %v616 = vadd.f32 0.0, %v615
        %617 = vmatmul.f32.gmra.mxu0 %v426
        %v618 = vpop.f32.mrf.mxu0
        %v619 = vadd.f32 0.0, %v618
        %620 = vmatmul.f32.gmra.mxu0 %v429
        %v621 = vpop.f32.mrf.mxu0
        %v622 = vadd.f32 0.0, %v621
        %623 = vmatmul.f32.gmra.mxu0 %v432
        %v624 = vpop.f32.mrf.mxu0
        %v625 = vadd.f32 0.0, %v624
        %626 = vmatmul.f32.gmra.mxu0 %v435
        %v627 = vpop.f32.mrf.mxu0
        %v628 = vadd.f32 0.0, %v627
        %629 = vmatmul.f32.gmra.mxu0 %v438
        %v630 = vpop.f32.mrf.mxu0
        %v631 = vadd.f32 0.0, %v630
        %632 = vmatmul.f32.gmra.mxu0 %v441
        %v633 = vpop.f32.mrf.mxu0
        %v634 = vadd.f32 0.0, %v633
        %635 = vmatmul.f32.gmra.mxu0 %v444
        %v636 = vpop.f32.mrf.mxu0
        %v637 = vadd.f32 0.0, %v636
        %638 = vmatmul.f32.gmra.mxu0 %v447
        %v639 = vpop.f32.mrf.mxu0
        %v640 = vadd.f32 0.0, %v639
        %641 = vmatmul.f32.gmra.mxu0 %v450
        %v642 = vpop.f32.mrf.mxu0
        %v643 = vadd.f32 0.0, %v642
        %644 = vmatmul.f32.gmra.mxu0 %v453
        %v645 = vpop.f32.mrf.mxu0
        %v646 = vadd.f32 0.0, %v645
        %647 = vdwg.mxu0
        %648 = vst [vmem:[%s202] sm:$0xff] %v553
        %649 = vst [vmem:[%s202 + $0x8] sm:$0xff] %v556
        %650 = vst [vmem:[%s202 + $0x10] sm:$0xff] %v559
        %651 = vst [vmem:[%s202 + $0x18] sm:$0xff] %v562
        %652 = vst [vmem:[%s202 + $0x20] sm:$0xff] %v565
        %653 = vst [vmem:[%s202 + $0x28] sm:$0xff] %v568
        %654 = vst [vmem:[%s202 + $0x30] sm:$0xff] %v571
        %655 = vst [vmem:[%s202 + $0x38] sm:$0xff] %v574
        %656 = vst [vmem:[%s202 + $0x40] sm:$0xff] %v577
        %657 = vst [vmem:[%s202 + $0x48] sm:$0xff] %v580
        %658 = vst [vmem:[%s202 + $0x50] sm:$0xff] %v583
        %659 = vst [vmem:[%s202 + $0x58] sm:$0xff] %v586
        %660 = vst [vmem:[%s202 + $0x60] sm:$0xff] %v589
        %661 = vst [vmem:[%s202 + $0x68] sm:$0xff] %v592
        %662 = vst [vmem:[%s202 + $0x70] sm:$0xff] %v595
        %663 = vst [vmem:[%s202 + $0x78] sm:$0xff] %v598
        %664 = vst [vmem:[%s202 + $0x80] sm:$0xff] %v601
        %665 = vst [vmem:[%s202 + $0x88] sm:$0xff] %v604
        %666 = vst [vmem:[%s202 + $0x90] sm:$0xff] %v607
        %667 = vst [vmem:[%s202 + $0x98] sm:$0xff] %v610
        %668 = vst [vmem:[%s202 + $0xa0] sm:$0xff] %v613
        %669 = vst [vmem:[%s202 + $0xa8] sm:$0xff] %v616
        %670 = vst [vmem:[%s202 + $0xb0] sm:$0xff] %v619
        %671 = vst [vmem:[%s202 + $0xb8] sm:$0xff] %v622
        %672 = vst [vmem:[%s202 + $0xc0] sm:$0xff] %v625
        %673 = vst [vmem:[%s202 + $0xc8] sm:$0xff] %v628
        %674 = vst [vmem:[%s202 + $0xd0] sm:$0xff] %v631
        %675 = vst [vmem:[%s202 + $0xd8] sm:$0xff] %v634
        %676 = vst [vmem:[%s202 + $0xe0] sm:$0xff] %v637
        %677 = vst [vmem:[%s202 + $0xe8] sm:$0xff] %v640
        %678 = vst [vmem:[%s202 + $0xf0] sm:$0xff] %v643
        %679 = vst [vmem:[%s202 + $0xf8] sm:$0xff] %v646
        %s680 = sand.u32 %s98, 1
        %s681 = scalar_lea.sflag [#allocation3], %s680
        %s682 = sand.u32 %s98, 1
        %s683 = smul.addr %s682, 128
        %s684 = scalar_lea.vmem [#allocation2], %s683
        %s685 = sand.u32 %s124, 1
        %s686 = scalar_lea.sflag [#allocation5], %s685
        %s687 = sand.u32 %s124, 1
        %s688 = smul.addr %s687, 256
        %s689 = scalar_lea.vmem [#allocation4], %s688
        // Predicated region
        $region33: #{tpu_custom_call.1} parent=31 // pred_check
          %p690 = pneg %p108
        $region34: #{tpu_custom_call.1} parent=31 // pred_check_branch
          %692 = sbr.rel (%p690) target = $region36
        $region35: #{tpu_custom_call.1} parent=31 // pred_region
          %s693 = smul.u32 32, %s22
          %695 = vsyncadd %s681, 0
          %s696 = smul.addr %s693, 4
          %s697 = scalar_lea.hbm %s3, %s696
          %s698 = sshll.u32 %s684, 4
          %s699 = int_to_ptr.vmem [resolvable:$true] %s698
          %s700 = sshll.u32 %s697, 4
          %s701 = int_to_ptr.hbm [resolvable:$true] %s700
          %706 = dma.vmem_to_hbm [thread:$0]  %s699, 2048, %s701, %s681, 64, 64, 4
        $region36: #{tpu_custom_call.1} parent=31 // pred_fallthru
          _
        // Predicated region
        $region37: #{tpu_custom_call.1} parent=31 // pred_check
          %p707 = pneg %p134
        $region38: #{tpu_custom_call.1} parent=31 // pred_check_branch
          %709 = sbr.rel (%p707) target = $region40
        $region39: #{tpu_custom_call.1} parent=31 // pred_region
          %s710 = smul.u32 32, %s22
          %712 = vsyncadd %s686, 0
          %s713 = smul.addr %s710, 8
          %s714 = scalar_lea.hbm %s4, %s713
          %s715 = sshll.u32 %s689, 4
          %s716 = int_to_ptr.vmem [resolvable:$true] %s715
          %s717 = sshll.u32 %s714, 4
          %s718 = int_to_ptr.hbm [resolvable:$true] %s717
          %723 = dma.vmem_to_hbm [thread:$0]  %s716, 4096, %s718, %s686, 128, 128, 8
        $region40: #{tpu_custom_call.1} parent=31 // pred_fallthru
          _
      $region32: #{tpu_custom_call.1} parent=5 // pred_fallthru
        _
      %p724 = scmp.le.s32.totalorder 2, %s17
      // Predicated region
      $region41: #{tpu_custom_call.1} parent=5 // pred_check
        %p725 = pneg %p724
      $region42: #{tpu_custom_call.1} parent=5 // pred_check_branch
        %727 = sbr.rel (%p725) target = $region44
      $region43: #{tpu_custom_call.1} parent=5 // pred_region
        %s728 = ssub.s32 %s17, 2
        // Predicated region
        $region45: #{tpu_custom_call.1} parent=43 // pred_check
          %p729 = pneg %p114
        $region46: #{tpu_custom_call.1} parent=43 // pred_check_branch
          %731 = sbr.rel (%p729) target = $region48
        $region47: #{tpu_custom_call.1} parent=43 // pred_region
          %s732 = sand.u32 %s99, 1
          %s733 = scalar_lea.sflag [#allocation3], %s732
          %s734 = sand.u32 %s99, 1
          %s735 = smul.addr %s734, 128
          %s736 = scalar_lea.vmem [#allocation2], %s735
          %738 = dma.done %s733, 2048
        $region48: #{tpu_custom_call.1} parent=43 // pred_fallthru
          _
        // Predicated region
        $region49: #{tpu_custom_call.1} parent=43 // pred_check
          %p739 = pneg %p140
        $region50: #{tpu_custom_call.1} parent=43 // pred_check_branch
          %741 = sbr.rel (%p739) target = $region52
        $region51: #{tpu_custom_call.1} parent=43 // pred_region
          %s742 = sand.u32 %s125, 1
          %s743 = scalar_lea.sflag [#allocation5], %s742
          %s744 = sand.u32 %s125, 1
          %s745 = smul.addr %s744, 256
          %s746 = scalar_lea.vmem [#allocation4], %s745
          %748 = dma.done %s743, 4096
        $region52: #{tpu_custom_call.1} parent=43 // pred_fallthru
          _
      $region44: #{tpu_custom_call.1} parent=5 // pred_fallthru
        _
    $region6: #{tpu_custom_call.1} parent=1 // loop_footer
      %s21 = sadd.s32 1, %s17
    $region7: #{tpu_custom_call.1} parent=1 // loop_footer_branch
      %16 = sbr.rel target = $region3
    $region8: #{tpu_custom_call.1} parent=1 // loop_exit
      _
    %749 = vsyncpa [#allocation3], 1
    %s750 = scalar_lea.sflag [#allocation3], 1
    %751 = vsyncpa %s750, 1
    %752 = vsyncpa [#allocation5], 1
    %s753 = scalar_lea.sflag [#allocation5], 1
    %754 = vsyncpa %s753, 1

</llo_original>
